<compile_context>
chip_gen: v5e
topology: v5e:2x2
jax: 0.10.0
libtpu: 0.0.40
codegen_flags: <defaults>
</compile_context>

<pallas_src>
import functools

import jax
import jax.numpy as jnp
from jax.experimental import pallas as pl
from jax.experimental.pallas import tpu as pltpu


# Logical layer sizes of the PyTorch module: (in_features, out_features).
DIMS = [(10, 250), (250, 50), (50, 25), (25, 3)]
# Lane-aligned sizes used inside the kernel (hidden dims padded to 256/128).
PADDED_DIMS = [(10, 256), (256, 128), (128, 128), (128, 3)]


def _round_up(x, m):
    return ((x + m - 1) // m) * m


def value_mlp_kernel(x_ref,
                     w1_ref, b1_ref,
                     w2_ref, b2_ref,
                     w3_ref, b3_ref,
                     w4_ref, b4_ref,
                     o_ref):
    # Weights are bf16 (full MXU rate); accumulate in f32; bias + ReLU on the
    # VPU in f32; re-cast to bf16 only to feed the next MXU pass.
    # fc1 + ReLU : (TB,10)bf16 @ (10,256)bf16 -> f32
    h = jnp.dot(x_ref[...].astype(jnp.bfloat16), w1_ref[...],
                preferred_element_type=jnp.float32)
    h = jnp.maximum(h + b1_ref[...], 0.0)
    # fc2 + ReLU : (TB,256) @ (256,128)
    h = jnp.dot(h.astype(jnp.bfloat16), w2_ref[...],
                preferred_element_type=jnp.float32)
    h = jnp.maximum(h + b2_ref[...], 0.0)
    # fc3 + ReLU : (TB,128) @ (128,128)
    h = jnp.dot(h.astype(jnp.bfloat16), w3_ref[...],
                preferred_element_type=jnp.float32)
    h = jnp.maximum(h + b3_ref[...], 0.0)
    # fc4 (no activation) : (TB,128) @ (128,3)
    h = jnp.dot(h.astype(jnp.bfloat16), w4_ref[...],
                preferred_element_type=jnp.float32)
    o_ref[...] = (h + b4_ref[...]).astype(o_ref.dtype)


def init_params(key):
    """Deterministic init mirroring nn.Linear(in, out): U(-1/sqrt(in), 1/sqrt(in)).

    Weights stored as (in_features, out_features) f32; biases as (1, out) f32."""
    params = []
    for (fan_in, fan_out) in DIMS:
        key, kw, kb = jax.random.split(key, 3)
        bound = 1.0 / jnp.sqrt(fan_in)
        w = jax.random.uniform(kw, (fan_in, fan_out), jnp.float32, -bound, bound)
        b = jax.random.uniform(kb, (1, fan_out), jnp.float32, -bound, bound)
        params.append((w, b))
    return params


def pad_params(params):
    """Zero-pad to lane-aligned shapes; weights cast to bf16, biases kept f32.

    Padding is numerically exact (padded columns -> ReLU(0)=0 -> zero rows of
    the next layer); only the bf16 cast of the real weights changes values."""
    padded = []
    for (w, b), (pin, pout) in zip(params, PADDED_DIMS):
        fi, fo = w.shape
        wp = jnp.zeros((pin, pout), jnp.bfloat16).at[:fi, :fo].set(
            w.astype(jnp.bfloat16))
        bpad = jnp.zeros((1, pout), jnp.float32).at[:, :fo].set(b)
        padded.append((wp, bpad))
    return padded


@functools.partial(jax.jit, static_argnames=("block_b",))
def value_forward(x, padded_params, *, block_b=4096):
    """x: (B, 10) float32 -> (B, 3) float32. `padded_params` from pad_params().

    block_b is the batch-tile cap: 4096 is safe on all generations; callers on
    v5e/v6e (128 MiB VMEM) may raise it to 8192-16384."""
    B, f_in = x.shape

    # Batch tile: always a multiple of 8 sublanes.
    bp8 = _round_up(B, 8)
    tb = _round_up(min(block_b, bp8), 8)
    # Guarantee >= 2 grid steps whenever the batch allows it, so the
    # "parallel" axis can split across v7x's two TensorCores.
    if bp8 // tb < 2 and bp8 >= 16:
        tb = _round_up(pl.cdiv(bp8, 2), 8)
    bp = _round_up(B, tb)
    if bp != B:
        x = jnp.pad(x, ((0, bp - B), (0, 0)))
    grid = (bp // tb,)

    flat = []
    for w, b in padded_params:
        flat.extend([w, b])

    def const_spec(arr):
        # Whole-array block, same block every grid step -> stays VMEM-resident.
        return pl.BlockSpec(arr.shape, lambda i: (0, 0))

    in_specs = [pl.BlockSpec((tb, f_in), lambda i: (i, 0))]
    in_specs += [const_spec(a) for a in flat]
    n_out = PADDED_DIMS[-1][1]
    out_specs = pl.BlockSpec((tb, n_out), lambda i: (i, 0))

    # Explicit VMEM budget sized from the actual tile footprint (lane-padded
    # x/out tiles double-buffered, resident weights, f32/bf16 intermediates),
    # with headroom; clamped so it is valid on every generation.
    weight_bytes = sum(int(a.size) * a.dtype.itemsize for a in flat)
    per_row_bytes = (
        2 * 2 * 128 * 4                  # x + out tiles, 128-lane padded, double-buffered
        + (256 + 128 + 128 + 128) * 4    # f32 intermediates h1..h4
        + (128 + 256 + 128 + 128) * 2    # bf16 casts fed to the MXU
    )
    est = tb * per_row_bytes + 2 * weight_bytes
    vmem_limit = max(32 << 20, min(int(est * 1.6) + (2 << 20), 100 << 20))

    flops = 2 * bp * sum(fi * fo for fi, fo in DIMS)
    # Count lane-padded x/out rows (actual DMA traffic) + one pass of weights.
    bytes_accessed = bp * (128 + 128) * 4 + weight_bytes

    out = pl.pallas_call(
        value_mlp_kernel,
        out_shape=jax.ShapeDtypeStruct((bp, n_out), jnp.float32),
        grid=grid,
        in_specs=in_specs,
        out_specs=out_specs,
        compiler_params=pltpu.CompilerParams(
            dimension_semantics=("parallel",),
            vmem_limit_bytes=vmem_limit),
        cost_estimate=pl.CostEstimate(
            flops=flops, transcendentals=0, bytes_accessed=bytes_accessed),
    )(x, *flat)
    return out[:B]


def reference_forward(x, params):
    h = x
    for i, (w, b) in enumerate(params):
        h = h @ w + b
        if i < len(params) - 1:
            h = jnp.maximum(h, 0.0)
    return h


if __name__ == "__main__":
    key = jax.random.PRNGKey(0)
    key, kx, kx2 = jax.random.split(key, 3)

    params = init_params(key)
    padded = pad_params(params)

    # bf16 matmul operands -> compare against the f32 reference loosely.
    TOL = 3e-2

    # Small-shape check (single grid step).
    batch = 8
    x = jax.random.normal(kx, (batch, 10), jnp.float32)
    out = jax.block_until_ready(value_forward(x, padded))
    ref = reference_forward(x, params)
    assert out.shape == (batch, 3), out.shape
    assert jnp.allclose(out, ref, atol=TOL, rtol=TOL), float(jnp.max(jnp.abs(out - ref)))

    # Exercise batch padding, the >=2-grid-step guarantee, and a multi-step grid.
    batch2 = 300
    x2 = jax.random.normal(kx2, (batch2, 10), jnp.float32)
    out2 = jax.block_until_ready(value_forward(x2, padded))               # split to 2 steps
    out3 = jax.block_until_ready(value_forward(x2, padded, block_b=128))  # 3 steps of 128
    ref2 = reference_forward(x2, params)
    assert out2.shape == (batch2, 3), out2.shape
    assert jnp.allclose(out2, ref2, atol=TOL, rtol=TOL), float(jnp.max(jnp.abs(out2 - ref2)))
    assert jnp.allclose(out3, ref2, atol=TOL, rtol=TOL), float(jnp.max(jnp.abs(out3 - ref2)))

    print("KERNEL_OK")
</pallas_src>

<mosaic_0001>
module attributes {stable_mosaic.version = 11 : i64} {
  func.func @value_mlp_kernel(%arg0: i32, %arg1: memref<8x10xf32, #tpu.memory_space<vmem>>, %arg2: memref<10x256xbf16, #tpu.memory_space<vmem>>, %arg3: memref<1x256xf32, #tpu.memory_space<vmem>>, %arg4: memref<256x128xbf16, #tpu.memory_space<vmem>>, %arg5: memref<1x128xf32, #tpu.memory_space<vmem>>, %arg6: memref<128x128xbf16, #tpu.memory_space<vmem>>, %arg7: memref<1x128xf32, #tpu.memory_space<vmem>>, %arg8: memref<128x3xbf16, #tpu.memory_space<vmem>>, %arg9: memref<1x3xf32, #tpu.memory_space<vmem>>, %arg10: memref<8x3xf32, #tpu.memory_space<vmem>>) attributes {dimension_semantics = [#tpu.dimension_semantics<parallel>], iteration_bounds = array<i64: 1>, scalar_prefetch = 0 : i64, scratch_operands = 0 : i64, tpu.core_type = #tpu.core_type<tc>, window_params = [{transform_indices = @transform_0, window_bounds = array<i64: 8, 10>}, {pipeline_mode = #tpu.pipeline_mode<synchronous>, transform_indices = @transform_1, window_bounds = array<i64: 10, 256>}, {pipeline_mode = #tpu.pipeline_mode<synchronous>, transform_indices = @transform_2, window_bounds = array<i64: 1, 256>}, {pipeline_mode = #tpu.pipeline_mode<synchronous>, transform_indices = @transform_3, window_bounds = array<i64: 256, 128>}, {pipeline_mode = #tpu.pipeline_mode<synchronous>, transform_indices = @transform_4, window_bounds = array<i64: 1, 128>}, {pipeline_mode = #tpu.pipeline_mode<synchronous>, transform_indices = @transform_5, window_bounds = array<i64: 128, 128>}, {pipeline_mode = #tpu.pipeline_mode<synchronous>, transform_indices = @transform_6, window_bounds = array<i64: 1, 128>}, {pipeline_mode = #tpu.pipeline_mode<synchronous>, transform_indices = @transform_7, window_bounds = array<i64: 128, 3>}, {pipeline_mode = #tpu.pipeline_mode<synchronous>, transform_indices = @transform_8, window_bounds = array<i64: 1, 3>}, {transform_indices = @transform_9, window_bounds = array<i64: 8, 3>}]} {
    %c0 = arith.constant 0 : index
    %c0_0 = arith.constant 0 : index
    %0 = vector.load %arg1[%c0, %c0_0] : memref<8x10xf32, #tpu.memory_space<vmem>>, vector<8x10xf32>
    %1 = arith.truncf %0 : vector<8x10xf32> to vector<8x10xbf16>
    %c0_1 = arith.constant 0 : index
    %c0_2 = arith.constant 0 : index
    %2 = vector.load %arg2[%c0_1, %c0_2] : memref<10x256xbf16, #tpu.memory_space<vmem>>, vector<10x256xbf16>
    %cst = arith.constant dense<0.000000e+00> : vector<8x256xf32>
    %3 = tpu.matmul %1, %2, %cst {dimension_numbers = #tpu.dot_dimension_numbers<[1], [0], [0], [1], [0, 0, 1, 1], [], []>} : vector<8x10xbf16>, vector<10x256xbf16>, vector<8x256xf32> -> vector<8x256xf32>
    %c0_3 = arith.constant 0 : index
    %c0_4 = arith.constant 0 : index
    %4 = vector.load %arg3[%c0_3, %c0_4] : memref<1x256xf32, #tpu.memory_space<vmem>>, vector<1x256xf32>
    %5 = vector.broadcast %4 : vector<1x256xf32> to vector<8x256xf32>
    %6 = arith.addf %3, %5 : vector<8x256xf32>
    %cst_5 = arith.constant 0.000000e+00 : f32
    %7 = vector.broadcast %cst_5 : f32 to vector<8x256xf32>
    %8 = arith.maximumf %6, %7 : vector<8x256xf32>
    %9 = arith.truncf %8 : vector<8x256xf32> to vector<8x256xbf16>
    %c0_6 = arith.constant 0 : index
    %c0_7 = arith.constant 0 : index
    %10 = vector.load %arg4[%c0_6, %c0_7] : memref<256x128xbf16, #tpu.memory_space<vmem>>, vector<256x128xbf16>
    %cst_8 = arith.constant dense<0.000000e+00> : vector<8x128xf32>
    %11 = tpu.matmul %9, %10, %cst_8 {dimension_numbers = #tpu.dot_dimension_numbers<[1], [0], [0], [1], [0, 0, 1, 1], [], []>} : vector<8x256xbf16>, vector<256x128xbf16>, vector<8x128xf32> -> vector<8x128xf32>
    %c0_9 = arith.constant 0 : index
    %c0_10 = arith.constant 0 : index
    %12 = vector.load %arg5[%c0_9, %c0_10] : memref<1x128xf32, #tpu.memory_space<vmem>>, vector<1x128xf32>
    %13 = vector.broadcast %12 : vector<1x128xf32> to vector<8x128xf32>
    %14 = arith.addf %11, %13 : vector<8x128xf32>
    %cst_11 = arith.constant 0.000000e+00 : f32
    %15 = vector.broadcast %cst_11 : f32 to vector<8x128xf32>
    %16 = arith.maximumf %14, %15 : vector<8x128xf32>
    %17 = arith.truncf %16 : vector<8x128xf32> to vector<8x128xbf16>
    %c0_12 = arith.constant 0 : index
    %c0_13 = arith.constant 0 : index
    %18 = vector.load %arg6[%c0_12, %c0_13] : memref<128x128xbf16, #tpu.memory_space<vmem>>, vector<128x128xbf16>
    %cst_14 = arith.constant dense<0.000000e+00> : vector<8x128xf32>
    %19 = tpu.matmul %17, %18, %cst_14 {dimension_numbers = #tpu.dot_dimension_numbers<[1], [0], [0], [1], [0, 0, 1, 1], [], []>} : vector<8x128xbf16>, vector<128x128xbf16>, vector<8x128xf32> -> vector<8x128xf32>
    %c0_15 = arith.constant 0 : index
    %c0_16 = arith.constant 0 : index
    %20 = vector.load %arg7[%c0_15, %c0_16] : memref<1x128xf32, #tpu.memory_space<vmem>>, vector<1x128xf32>
    %21 = vector.broadcast %20 : vector<1x128xf32> to vector<8x128xf32>
    %22 = arith.addf %19, %21 : vector<8x128xf32>
    %cst_17 = arith.constant 0.000000e+00 : f32
    %23 = vector.broadcast %cst_17 : f32 to vector<8x128xf32>
    %24 = arith.maximumf %22, %23 : vector<8x128xf32>
    %25 = arith.truncf %24 : vector<8x128xf32> to vector<8x128xbf16>
    %c0_18 = arith.constant 0 : index
    %c0_19 = arith.constant 0 : index
    %26 = vector.load %arg8[%c0_18, %c0_19] : memref<128x3xbf16, #tpu.memory_space<vmem>>, vector<128x3xbf16>
    %cst_20 = arith.constant dense<0.000000e+00> : vector<8x3xf32>
    %27 = tpu.matmul %25, %26, %cst_20 {dimension_numbers = #tpu.dot_dimension_numbers<[1], [0], [0], [1], [0, 0, 1, 1], [], []>} : vector<8x128xbf16>, vector<128x3xbf16>, vector<8x3xf32> -> vector<8x3xf32>
    %c0_21 = arith.constant 0 : index
    %c0_22 = arith.constant 0 : index
    %28 = vector.load %arg9[%c0_21, %c0_22] : memref<1x3xf32, #tpu.memory_space<vmem>>, vector<1x3xf32>
    %29 = vector.broadcast %28 : vector<1x3xf32> to vector<8x3xf32>
    %30 = arith.addf %27, %29 : vector<8x3xf32>
    %c0_23 = arith.constant 0 : index
    %c0_24 = arith.constant 0 : index
    %31 = vector.load %arg10[%c0_23, %c0_24] : memref<8x3xf32, #tpu.memory_space<vmem>>, vector<8x3xf32>
    tpu.vector_store %arg10[%c0_23, %c0_24], %30 {strides = array<i32>} : memref<8x3xf32, #tpu.memory_space<vmem>>, vector<8x3xf32>,
    return
  }
  func.func @transform_0(%arg0: i32) -> (i32, i32) {
    %c0_i32 = arith.constant 0 : i32
    %c0_i32_0 = arith.constant 0 : i32
    return %arg0, %c0_i32 : i32, i32
  }
  func.func @transform_1(%arg0: i32) -> (i32, i32) {
    %c0_i32 = arith.constant 0 : i32
    %c0_i32_0 = arith.constant 0 : i32
    %c0_i32_1 = arith.constant 0 : i32
    return %c0_i32, %c0_i32_0 : i32, i32
  }
  func.func @transform_2(%arg0: i32) -> (i32, i32) {
    %c0_i32 = arith.constant 0 : i32
    %c0_i32_0 = arith.constant 0 : i32
    %c0_i32_1 = arith.constant 0 : i32
    return %c0_i32, %c0_i32_0 : i32, i32
  }
  func.func @transform_3(%arg0: i32) -> (i32, i32) {
    %c0_i32 = arith.constant 0 : i32
    %c0_i32_0 = arith.constant 0 : i32
    %c0_i32_1 = arith.constant 0 : i32
    return %c0_i32, %c0_i32_0 : i32, i32
  }
  func.func @transform_4(%arg0: i32) -> (i32, i32) {
    %c0_i32 = arith.constant 0 : i32
    %c0_i32_0 = arith.constant 0 : i32
    %c0_i32_1 = arith.constant 0 : i32
    return %c0_i32, %c0_i32_0 : i32, i32
  }
  func.func @transform_5(%arg0: i32) -> (i32, i32) {
    %c0_i32 = arith.constant 0 : i32
    %c0_i32_0 = arith.constant 0 : i32
    %c0_i32_1 = arith.constant 0 : i32
    return %c0_i32, %c0_i32_0 : i32, i32
  }
  func.func @transform_6(%arg0: i32) -> (i32, i32) {
    %c0_i32 = arith.constant 0 : i32
    %c0_i32_0 = arith.constant 0 : i32
    %c0_i32_1 = arith.constant 0 : i32
    return %c0_i32, %c0_i32_0 : i32, i32
  }
  func.func @transform_7(%arg0: i32) -> (i32, i32) {
    %c0_i32 = arith.constant 0 : i32
    %c0_i32_0 = arith.constant 0 : i32
    %c0_i32_1 = arith.constant 0 : i32
    return %c0_i32, %c0_i32_0 : i32, i32
  }
  func.func @transform_8(%arg0: i32) -> (i32, i32) {
    %c0_i32 = arith.constant 0 : i32
    %c0_i32_0 = arith.constant 0 : i32
    %c0_i32_1 = arith.constant 0 : i32
    return %c0_i32, %c0_i32_0 : i32, i32
  }
  func.func @transform_9(%arg0: i32) -> (i32, i32) {
    %c0_i32 = arith.constant 0 : i32
    %c0_i32_0 = arith.constant 0 : i32
    return %arg0, %c0_i32 : i32, i32
  }
}

</mosaic_0001>

<llo_original>
// kernel: value_forward.1
$region0: #{value_forward.1}
  #allocation0 [shape = 'u32[]', space=smem, size = 0x4, offset = 0x4, fixed_abs, tag = 'smem constant byte address 0x4 - core index']
  #allocation1 [shape = 'u32[72,128]{1,0:T(1,128)}', space=vmem, size = 0x9000, scoped, tag = 'internal scratch']
  %s0 = inlined_call_operand.hbm [shape: f32[8,10], index: 0, kind: input, shape index: {}]
  %s1 = inlined_call_operand.hbm [shape: bf16[10,256], index: 1, kind: input, shape index: {}]
  %s2 = inlined_call_operand.vmem [shape: f32[1,256], index: 2, kind: input, shape index: {}]
  %s3 = inlined_call_operand.hbm [shape: bf16[256,128], index: 3, kind: input, shape index: {}]
  %s4 = inlined_call_operand.vmem [shape: f32[1,128], index: 4, kind: input, shape index: {}]
  %s5 = inlined_call_operand.vmem [shape: bf16[128,128], index: 5, kind: input, shape index: {}]
  %s6 = inlined_call_operand.vmem [shape: f32[1,128], index: 6, kind: input, shape index: {}]
  %s7 = inlined_call_operand.vmem [shape: bf16[128,3], index: 7, kind: input, shape index: {}]
  %s8 = inlined_call_operand.vmem [shape: f32[1,3], index: 8, kind: input, shape index: {}]
  %s9 = inlined_call_operand.vmem [shape: f32[8,3], index: 9, kind: output, shape index: {}]
  %s10 = sld [smem:[#allocation0]]
  $region58: #{value_forward.1} parent=0
    _
  %s12 = ssub.s32 1, %s10
  %s13 = scalar_select 0, %s12, %s10
  $region1: #{value_forward.1} parent=0
    #allocation2 [shape = 'u8[4096]{0}', space=vmem, size = 0x1000, scoped, tag = 'input window, operand 0, single buffered']
    #allocation3 [shape = 's32[1]{0}', space=sflag, size = 0x4, scoped, tag = 'scoped memory for value_forward.1']
    #allocation4 [shape = 'u8[8192]{0}', space=vmem, size = 0x2000, scoped, tag = 'input window, operand 1, single buffered']
    #allocation5 [shape = 's32[1]{0}', space=sflag, size = 0x4, scoped, tag = 'scoped memory for value_forward.1']
    #allocation6 [shape = 'u8[65536]{0}', space=vmem, size = 0x10000, scoped, tag = 'input window, operand 3, single buffered']
    %14 = vsyncpa [#allocation3], 0
    %15 = vsyncpa [#allocation5], 0
    // Predicated region
    $region2: #{value_forward.1} parent=1 // pred_check
      _
    $region3: #{value_forward.1} parent=1 // pred_check_branch
      %17 = sbr.rel (0) target = $region5
    $region4: #{value_forward.1} parent=1 // pred_region
      %19 = vsyncadd [#allocation3], 0
      %s21 = sshll.u32 %s0, 4
      %s22 = int_to_ptr.hbm [resolvable:$true] %s21
      %s23 = sshll.u32 [#allocation2], 4
      %s24 = int_to_ptr.vmem [resolvable:$true] %s23
      %26 = dma.hbm_to_vmem [thread:$0]  %s22, 128, %s24, [#allocation3]
    $region5: #{value_forward.1} parent=1 // pred_fallthru
      _
    // Predicated region
    $region6: #{value_forward.1} parent=1 // pred_check
      _
    $region7: #{value_forward.1} parent=1 // pred_check_branch
      %28 = sbr.rel (0) target = $region9
    $region8: #{value_forward.1} parent=1 // pred_region
      %30 = vsyncadd [#allocation5], 0
      %s31 = sshll.u32 %s1, 4
      %s32 = int_to_ptr.hbm [resolvable:$true] %s31
      %s33 = sshll.u32 [#allocation4], 4
      %s34 = int_to_ptr.vmem [resolvable:$true] %s33
      %39 = dma.hbm_to_vmem [thread:$0]  %s32, 256, %s34, [#allocation5], 128, 128, 8
    $region9: #{value_forward.1} parent=1 // pred_fallthru
      _
    // Predicated region
    $region10: #{value_forward.1} parent=1 // pred_check
      _
    $region11: #{value_forward.1} parent=1 // pred_check_branch
      %41 = sbr.rel (0) target = $region13
    $region12: #{value_forward.1} parent=1 // pred_region
      _
    $region13: #{value_forward.1} parent=1 // pred_fallthru
      _
    // Predicated region
    $region14: #{value_forward.1} parent=1 // pred_check
      _
    $region15: #{value_forward.1} parent=1 // pred_check_branch
      %43 = sbr.rel (0) target = $region17
    $region16: #{value_forward.1} parent=1 // pred_region
      %45 = vsyncadd [#allocation5], 0
      %s46 = sshll.u32 %s3, 4
      %s47 = int_to_ptr.hbm [resolvable:$true] %s46
      %s48 = sshll.u32 [#allocation6], 4
      %s49 = int_to_ptr.vmem [resolvable:$true] %s48
      %54 = dma.hbm_to_vmem [thread:$0]  %s47, 2048, %s49, [#allocation5], 64, 64, 4
    $region17: #{value_forward.1} parent=1 // pred_fallthru
      _
    // Predicated region
    $region18: #{value_forward.1} parent=1 // pred_check
      _
    $region19: #{value_forward.1} parent=1 // pred_check_branch
      %56 = sbr.rel (0) target = $region21
    $region20: #{value_forward.1} parent=1 // pred_region
      _
    $region21: #{value_forward.1} parent=1 // pred_fallthru
      _
    // Predicated region
    $region22: #{value_forward.1} parent=1 // pred_check
      _
    $region23: #{value_forward.1} parent=1 // pred_check_branch
      %58 = sbr.rel (0) target = $region25
    $region24: #{value_forward.1} parent=1 // pred_region
      _
    $region25: #{value_forward.1} parent=1 // pred_fallthru
      _
    // Predicated region
    $region26: #{value_forward.1} parent=1 // pred_check
      _
    $region27: #{value_forward.1} parent=1 // pred_check_branch
      %60 = sbr.rel (0) target = $region29
    $region28: #{value_forward.1} parent=1 // pred_region
      _
    $region29: #{value_forward.1} parent=1 // pred_fallthru
      _
    // Predicated region
    $region30: #{value_forward.1} parent=1 // pred_check
      _
    $region31: #{value_forward.1} parent=1 // pred_check_branch
      %62 = sbr.rel (0) target = $region33
    $region32: #{value_forward.1} parent=1 // pred_region
      _
    $region33: #{value_forward.1} parent=1 // pred_fallthru
      _
    // Predicated region
    $region34: #{value_forward.1} parent=1 // pred_check
      _
    $region35: #{value_forward.1} parent=1 // pred_check_branch
      %64 = sbr.rel (0) target = $region37
    $region36: #{value_forward.1} parent=1 // pred_region
      _
    $region37: #{value_forward.1} parent=1 // pred_fallthru
      _
    // Predicated region
    $region38: #{value_forward.1} parent=1 // pred_check
      _
    $region39: #{value_forward.1} parent=1 // pred_check_branch
      %66 = sbr.rel (0) target = $region41
    $region40: #{value_forward.1} parent=1 // pred_region
      %68 = dma.done [#allocation3], 128
    $region41: #{value_forward.1} parent=1 // pred_fallthru
      _
    // Predicated region
    $region42: #{value_forward.1} parent=1 // pred_check
      _
    $region43: #{value_forward.1} parent=1 // pred_check_branch
      %70 = sbr.rel (0) target = $region45
    $region44: #{value_forward.1} parent=1 // pred_region
      %72 = dma.done [#allocation5], 256
    $region45: #{value_forward.1} parent=1 // pred_fallthru
      _
    // Predicated region
    $region46: #{value_forward.1} parent=1 // pred_check
      _
    $region47: #{value_forward.1} parent=1 // pred_check_branch
      %74 = sbr.rel (0) target = $region49
    $region48: #{value_forward.1} parent=1 // pred_region
      %76 = dma.done [#allocation5], 2048
    $region49: #{value_forward.1} parent=1 // pred_fallthru
      _
    %v78 = vld [vmem:[#allocation2] sm:$0xff]
    %v79 = vpack.c.bf16 %v78, %v78
    %v80 = vld [vmem:[#allocation4] sm:$0xff]
    %v81 = vld [vmem:[#allocation4 + $0x8] sm:$0x11]
    %v82 = vld [vmem:[%s2] sm:$0x3]
    %v84 = vperm.slane %v82, 0
    %v85 = vperm.slane %v82, 1
    %v90 = vunpack.c.l.b16 %v80
    %v91 = vunpack.c.h.b16 %v80
    %v92 = vunpack.c.l.b16 %v81
    %v93 = vunpack.c.h.b16 %v81
    %v94 = vpack.c.b16 %v92, %v90
    %v95 = vpack.c.b16 %v93, %v91
    %vm96 = vcmask 80896
    %v98 = vsel %vm96, %v79, 0
    %vm100 = vcmask 1044480
    %v102 = vsel %vm100, %v94, 0
    %v105 = vsel %vm100, %v95, 0
    %107 = vmatpush.bf16.msra.mxu0 0
    %108 = vmatpush.bf16.msra.mxu0 0
    %109 = vmatpush.bf16.msra.mxu0 0
    %110 = vmatpush.bf16.msra.mxu0 0
    %111 = vmatpush.bf16.msra.mxu0 0
    %112 = vmatpush.bf16.msra.mxu0 0
    %113 = vmatpush.bf16.msra.mxu0 0
    %114 = vmatpush.bf16.msra.mxu0 %v102
    %115 = vmatmul.bf16.gmra.mxu0 %v98
    %v116 = vpop.f32.mrf.mxu0
    %v117 = vadd.f32 %v84, %v116
    %v118 = vpop.f32.mrf.mxu0
    %119 = vdwg.mxu0
    %120 = vmatpush.bf16.msra.mxu0 0
    %121 = vmatpush.bf16.msra.mxu0 0
    %122 = vmatpush.bf16.msra.mxu0 0
    %123 = vmatpush.bf16.msra.mxu0 0
    %124 = vmatpush.bf16.msra.mxu0 0
    %125 = vmatpush.bf16.msra.mxu0 0
    %126 = vmatpush.bf16.msra.mxu0 0
    %127 = vmatpush.bf16.msra.mxu0 %v105
    %128 = vmatmul.bf16.gmra.mxu0 %v98
    %v129 = vpop.f32.mrf.mxu0
    %v130 = vadd.f32 %v85, %v129
    %v131 = vpop.f32.mrf.mxu0
    %132 = vdwg.mxu0
    %v133 = vmax.f32 %v117, 0.0
    %v134 = vmax.f32 %v130, 0.0
    %v135 = vpack.c.bf16 %v133, %v133
    %v136 = vpack.c.bf16 %v134, %v134
    %v137 = vld [vmem:[#allocation6] sm:$0xf]
    %v138 = vld [vmem:[#allocation6 + $0x4] sm:$0xf]
    %v139 = vld [vmem:[#allocation6 + $0x8] sm:$0xf]
    %v140 = vld [vmem:[#allocation6 + $0xc] sm:$0xf]
    %v141 = vld [vmem:[#allocation6 + $0x10] sm:$0xf]
    %v142 = vld [vmem:[#allocation6 + $0x14] sm:$0xf]
    %v143 = vld [vmem:[#allocation6 + $0x18] sm:$0xf]
    %v144 = vld [vmem:[#allocation6 + $0x1c] sm:$0xf]
    %v145 = vld [vmem:[#allocation6 + $0x20] sm:$0xf]
    %v146 = vld [vmem:[#allocation6 + $0x24] sm:$0xf]
    %v147 = vld [vmem:[#allocation6 + $0x28] sm:$0xf]
    %v148 = vld [vmem:[#allocation6 + $0x2c] sm:$0xf]
    %v149 = vld [vmem:[#allocation6 + $0x30] sm:$0xf]
    %v150 = vld [vmem:[#allocation6 + $0x34] sm:$0xf]
    %v151 = vld [vmem:[#allocation6 + $0x38] sm:$0xf]
    %v152 = vld [vmem:[#allocation6 + $0x3c] sm:$0xf]
    %v153 = vld [vmem:[#allocation6 + $0x40] sm:$0xf]
    %v154 = vld [vmem:[#allocation6 + $0x44] sm:$0xf]
    %v155 = vld [vmem:[#allocation6 + $0x48] sm:$0xf]
    %v156 = vld [vmem:[#allocation6 + $0x4c] sm:$0xf]
    %v157 = vld [vmem:[#allocation6 + $0x50] sm:$0xf]
    %v158 = vld [vmem:[#allocation6 + $0x54] sm:$0xf]
    %v159 = vld [vmem:[#allocation6 + $0x58] sm:$0xf]
    %v160 = vld [vmem:[#allocation6 + $0x5c] sm:$0xf]
    %v161 = vld [vmem:[#allocation6 + $0x60] sm:$0xf]
    %v162 = vld [vmem:[#allocation6 + $0x64] sm:$0xf]
    %v163 = vld [vmem:[#allocation6 + $0x68] sm:$0xf]
    %v164 = vld [vmem:[#allocation6 + $0x6c] sm:$0xf]
    %v165 = vld [vmem:[#allocation6 + $0x70] sm:$0xf]
    %v166 = vld [vmem:[#allocation6 + $0x74] sm:$0xf]
    %v167 = vld [vmem:[#allocation6 + $0x78] sm:$0xf]
    %v168 = vld [vmem:[#allocation6 + $0x7c] sm:$0xf]
    %v169 = vld [vmem:[%s4] sm:$0x1]
    %v171 = vperm.slane %v169, 0
    %v205 = vunpack.c.l.b16 %v137
    %v206 = vunpack.c.l.b16 %v138
    %v207 = vunpack.c.l.b16 %v139
    %v208 = vunpack.c.l.b16 %v140
    %v209 = vunpack.c.l.b16 %v141
    %v210 = vunpack.c.l.b16 %v142
    %v211 = vunpack.c.l.b16 %v143
    %v212 = vunpack.c.l.b16 %v144
    %v213 = vunpack.c.l.b16 %v145
    %v214 = vunpack.c.l.b16 %v146
    %v215 = vunpack.c.l.b16 %v147
    %v216 = vunpack.c.l.b16 %v148
    %v217 = vunpack.c.l.b16 %v149
    %v218 = vunpack.c.l.b16 %v150
    %v219 = vunpack.c.l.b16 %v151
    %v220 = vunpack.c.l.b16 %v152
    %v221 = vunpack.c.l.b16 %v153
    %v222 = vunpack.c.l.b16 %v154
    %v223 = vunpack.c.l.b16 %v155
    %v224 = vunpack.c.l.b16 %v156
    %v225 = vunpack.c.l.b16 %v157
    %v226 = vunpack.c.l.b16 %v158
    %v227 = vunpack.c.l.b16 %v159
    %v228 = vunpack.c.l.b16 %v160
    %v229 = vunpack.c.l.b16 %v161
    %v230 = vunpack.c.l.b16 %v162
    %v231 = vunpack.c.l.b16 %v163
    %v232 = vunpack.c.l.b16 %v164
    %v233 = vunpack.c.l.b16 %v165
    %v234 = vunpack.c.l.b16 %v166
    %v235 = vunpack.c.l.b16 %v167
    %v236 = vunpack.c.l.b16 %v168
    %v237 = vpack.c.b16 %v206, %v205
    %v238 = vpack.c.b16 %v208, %v207
    %v239 = vpack.c.b16 %v210, %v209
    %v240 = vpack.c.b16 %v212, %v211
    %v241 = vpack.c.b16 %v214, %v213
    %v242 = vpack.c.b16 %v216, %v215
    %v243 = vpack.c.b16 %v218, %v217
    %v244 = vpack.c.b16 %v220, %v219
    %v245 = vpack.c.b16 %v222, %v221
    %v246 = vpack.c.b16 %v224, %v223
    %v247 = vpack.c.b16 %v226, %v225
    %v248 = vpack.c.b16 %v228, %v227
    %v249 = vpack.c.b16 %v230, %v229
    %v250 = vpack.c.b16 %v232, %v231
    %v251 = vpack.c.b16 %v234, %v233
    %v252 = vpack.c.b16 %v236, %v235
    %269 = vmatpush.bf16.msra.mxu0 %v244
    %270 = vmatpush.bf16.msra.mxu0 %v243
    %271 = vmatpush.bf16.msra.mxu0 %v242
    %272 = vmatpush.bf16.msra.mxu0 %v241
    %273 = vmatpush.bf16.msra.mxu0 %v240
    %274 = vmatpush.bf16.msra.mxu0 %v239
    %275 = vmatpush.bf16.msra.mxu0 %v238
    %276 = vmatpush.bf16.msra.mxu0 %v237
    %277 = vmatmul.bf16.gmra.mxu0 %v135
    %v278 = vpop.f32.mrf.mxu0
    %v279 = vadd.f32 %v171, %v278
    %v280 = vpop.f32.mrf.mxu0
    %281 = vdwg.mxu0
    %282 = vmatpush.bf16.msra.mxu0 %v252
    %283 = vmatpush.bf16.msra.mxu0 %v251
    %284 = vmatpush.bf16.msra.mxu0 %v250
    %285 = vmatpush.bf16.msra.mxu0 %v249
    %286 = vmatpush.bf16.msra.mxu0 %v248
    %287 = vmatpush.bf16.msra.mxu0 %v247
    %288 = vmatpush.bf16.msra.mxu0 %v246
    %289 = vmatpush.bf16.msra.mxu0 %v245
    %290 = vmatmul.bf16.gmra.mxu0 %v136
    %v291 = vpop.f32.mrf.mxu0
    %v292 = vadd.f32 %v279, %v291
    %v293 = vpop.f32.mrf.mxu0
    %294 = vdwg.mxu0
    %v295 = vmax.f32 %v292, 0.0
    %v296 = vpack.c.bf16 %v295, %v295
    %v297 = vld [vmem:[%s5] sm:$0xf]
    %v298 = vld [vmem:[%s5 + $0x4] sm:$0xf]
    %v299 = vld [vmem:[%s5 + $0x8] sm:$0xf]
    %v300 = vld [vmem:[%s5 + $0xc] sm:$0xf]
    %v301 = vld [vmem:[%s5 + $0x10] sm:$0xf]
    %v302 = vld [vmem:[%s5 + $0x14] sm:$0xf]
    %v303 = vld [vmem:[%s5 + $0x18] sm:$0xf]
    %v304 = vld [vmem:[%s5 + $0x1c] sm:$0xf]
    %v305 = vld [vmem:[%s5 + $0x20] sm:$0xf]
    %v306 = vld [vmem:[%s5 + $0x24] sm:$0xf]
    %v307 = vld [vmem:[%s5 + $0x28] sm:$0xf]
    %v308 = vld [vmem:[%s5 + $0x2c] sm:$0xf]
    %v309 = vld [vmem:[%s5 + $0x30] sm:$0xf]
    %v310 = vld [vmem:[%s5 + $0x34] sm:$0xf]
    %v311 = vld [vmem:[%s5 + $0x38] sm:$0xf]
    %v312 = vld [vmem:[%s5 + $0x3c] sm:$0xf]
    %v313 = vld [vmem:[%s6] sm:$0x1]
    %v315 = vperm.slane %v313, 0
    %v333 = vunpack.c.l.b16 %v297
    %v334 = vunpack.c.l.b16 %v298
    %v335 = vunpack.c.l.b16 %v299
    %v336 = vunpack.c.l.b16 %v300
    %v337 = vunpack.c.l.b16 %v301
    %v338 = vunpack.c.l.b16 %v302
    %v339 = vunpack.c.l.b16 %v303
    %v340 = vunpack.c.l.b16 %v304
    %v341 = vunpack.c.l.b16 %v305
    %v342 = vunpack.c.l.b16 %v306
    %v343 = vunpack.c.l.b16 %v307
    %v344 = vunpack.c.l.b16 %v308
    %v345 = vunpack.c.l.b16 %v309
    %v346 = vunpack.c.l.b16 %v310
    %v347 = vunpack.c.l.b16 %v311
    %v348 = vunpack.c.l.b16 %v312
    %v349 = vpack.c.b16 %v334, %v333
    %v350 = vpack.c.b16 %v336, %v335
    %v351 = vpack.c.b16 %v338, %v337
    %v352 = vpack.c.b16 %v340, %v339
    %v353 = vpack.c.b16 %v342, %v341
    %v354 = vpack.c.b16 %v344, %v343
    %v355 = vpack.c.b16 %v346, %v345
    %v356 = vpack.c.b16 %v348, %v347
    %365 = vmatpush.bf16.msra.mxu0 %v356
    %366 = vmatpush.bf16.msra.mxu0 %v355
    %367 = vmatpush.bf16.msra.mxu0 %v354
    %368 = vmatpush.bf16.msra.mxu0 %v353
    %369 = vmatpush.bf16.msra.mxu0 %v352
    %370 = vmatpush.bf16.msra.mxu0 %v351
    %371 = vmatpush.bf16.msra.mxu0 %v350
    %372 = vmatpush.bf16.msra.mxu0 %v349
    %373 = vmatmul.bf16.gmra.mxu0 %v296
    %v374 = vpop.f32.mrf.mxu0
    %v375 = vadd.f32 %v315, %v374
    %v376 = vpop.f32.mrf.mxu0
    %377 = vdwg.mxu0
    %v378 = vmax.f32 %v375, 0.0
    %v379 = vpack.c.bf16 %v378, %v378
    %v380 = vld [vmem:[%s7] sm:$0xf]
    %v381 = vld [vmem:[%s7 + $0x4] sm:$0xf]
    %v382 = vld [vmem:[%s7 + $0x8] sm:$0xf]
    %v383 = vld [vmem:[%s7 + $0xc] sm:$0xf]
    %v384 = vld [vmem:[%s7 + $0x10] sm:$0xf]
    %v385 = vld [vmem:[%s7 + $0x14] sm:$0xf]
    %v386 = vld [vmem:[%s7 + $0x18] sm:$0xf]
    %v387 = vld [vmem:[%s7 + $0x1c] sm:$0xf]
    %v388 = vld [vmem:[%s7 + $0x20] sm:$0xf]
    %v389 = vld [vmem:[%s7 + $0x24] sm:$0xf]
    %v390 = vld [vmem:[%s7 + $0x28] sm:$0xf]
    %v391 = vld [vmem:[%s7 + $0x2c] sm:$0xf]
    %v392 = vld [vmem:[%s7 + $0x30] sm:$0xf]
    %v393 = vld [vmem:[%s7 + $0x34] sm:$0xf]
    %v394 = vld [vmem:[%s7 + $0x38] sm:$0xf]
    %v395 = vld [vmem:[%s7 + $0x3c] sm:$0xf]
    %v396 = vld [vmem:[%s8] sm:$0x1]
    %v398 = vperm.slane %v396, 0
    %v416 = vunpack.c.l.b16 %v380
    %v417 = vunpack.c.l.b16 %v381
    %v418 = vunpack.c.l.b16 %v382
    %v419 = vunpack.c.l.b16 %v383
    %v420 = vunpack.c.l.b16 %v384
    %v421 = vunpack.c.l.b16 %v385
    %v422 = vunpack.c.l.b16 %v386
    %v423 = vunpack.c.l.b16 %v387
    %v424 = vunpack.c.l.b16 %v388
    %v425 = vunpack.c.l.b16 %v389
    %v426 = vunpack.c.l.b16 %v390
    %v427 = vunpack.c.l.b16 %v391
    %v428 = vunpack.c.l.b16 %v392
    %v429 = vunpack.c.l.b16 %v393
    %v430 = vunpack.c.l.b16 %v394
    %v431 = vunpack.c.l.b16 %v395
    %v432 = vpack.c.b16 %v417, %v416
    %v433 = vpack.c.b16 %v419, %v418
    %v434 = vpack.c.b16 %v421, %v420
    %v435 = vpack.c.b16 %v423, %v422
    %v436 = vpack.c.b16 %v425, %v424
    %v437 = vpack.c.b16 %v427, %v426
    %v438 = vpack.c.b16 %v429, %v428
    %v439 = vpack.c.b16 %v431, %v430
    %448 = vmatpush.bf16.msra.mxu0 %v439
    %449 = vmatpush.bf16.msra.mxu0 %v438
    %450 = vmatpush.bf16.msra.mxu0 %v437
    %451 = vmatpush.bf16.msra.mxu0 %v436
    %452 = vmatpush.bf16.msra.mxu0 %v435
    %453 = vmatpush.bf16.msra.mxu0 %v434
    %454 = vmatpush.bf16.msra.mxu0 %v433
    %455 = vmatpush.bf16.msra.mxu0 %v432
    %456 = vmatmul.bf16.gmra.mxu0 %v379
    %v457 = vpop.f32.mrf.mxu0
    %v458 = vadd.f32 %v398, %v457
    %v459 = vpop.f32.mrf.mxu0
    %460 = vdwg.mxu0
    %vm461 = vcmask 23552
    %462 = vst.msk [vmem:[%s9] sm:$0xff] %vm461, %v458
    // Predicated region
    $region50: #{value_forward.1} parent=1 // pred_check
      _
    $region51: #{value_forward.1} parent=1 // pred_check_branch
      %464 = sbr.rel (0) target = $region53
    $region52: #{value_forward.1} parent=1 // pred_region
      _
    $region53: #{value_forward.1} parent=1 // pred_fallthru
      _
    // Predicated region
    $region54: #{value_forward.1} parent=1 // pred_check
      _
    $region55: #{value_forward.1} parent=1 // pred_check_branch
      %466 = sbr.rel (0) target = $region57
    $region56: #{value_forward.1} parent=1 // pred_region
      _
    $region57: #{value_forward.1} parent=1 // pred_fallthru
      _
    %467 = vsyncpa [#allocation3], 1
    %468 = vsyncpa [#allocation5], 1

</llo_original>
